<compile_context>
chip_gen: v6e
topology: v6e:2x2x1
jax: 0.10.0
libtpu: 0.0.40
codegen_flags: <defaults>
</compile_context>

<pallas_src>
import functools

import jax
import jax.numpy as jnp
from jax.experimental import pallas as pl
from jax.experimental.pallas import tpu as pltpu

H1 = 256  # first hidden width  (fixed by the module)
H2 = 128  # second hidden width (fixed by the module)


def _round_up(x, m):
    return ((x + m - 1) // m) * m


def _cdiv(a, b):
    return (a + b - 1) // b


def _gelu(x):
    # tanh-approximate GELU: 0.5*x*(1 + tanh(sqrt(2/pi)*(x + 0.044715*x^3)))
    c = 0.7978845608028654
    x2 = x * x
    return 0.5 * x * (1.0 + jnp.tanh(c * x * (1.0 + 0.044715 * x2)))


def _mlp_kernel(x_ref, w1_ref, w2_ref, w3_ref, bias_ref, out_ref, *,
                d_out, compute_dtype):
    # Cast the streamed x tile to the MXU dtype in VMEM (cheap VPU op; avoids
    # an extra XLA pass over x in HBM).
    x = x_ref[...].astype(compute_dtype)

    # Packed bias rows (static slices of the resident (3, P) f32 VMEM tile).
    b1 = bias_ref[0:1, :H1]
    b2 = bias_ref[1:2, :H2]
    b3 = bias_ref[2:3, :d_out]

    # Matmuls in compute_dtype (bf16 on the MXU), accumulate + bias + GELU in f32.
    h = jnp.dot(x, w1_ref[...], preferred_element_type=jnp.float32) + b1
    h = _gelu(h)
    h = jnp.dot(h.astype(compute_dtype), w2_ref[...],
                preferred_element_type=jnp.float32) + b2
    h = _gelu(h)
    y = jnp.dot(h.astype(compute_dtype), w3_ref[...],
                preferred_element_type=jnp.float32) + b3

    # Single lane-dense store of the whole output slab.
    out_ref[...] = y.astype(out_ref.dtype)


def _pick_tb(B, tb_max=512):
    """Batch tile: multiple of 8 sublanes, up to tb_max rows per grid step.
    For batches > 256 that would otherwise be a single step, split into >= 2
    steps so both v7x TensorCores get work (each step still fills the 256-wide
    MXU M dimension)."""
    TB = min(_round_up(B, 8), tb_max)
    if B > 256 and _cdiv(B, TB) < 2:
        TB = _round_up(_cdiv(B, 2), 8)
    return TB


def prepare_params(params, compute_dtype=jnp.bfloat16):
    """One-time per-model prep (hoisted out of the hot path):
       * weights pre-cast to the MXU compute dtype,
       * the three bias vectors packed into a single (3, P) f32 slab
         (one DMA descriptor instead of three; f32 so bias-add stays f32)."""
    w1, b1, w2, b2, w3, b3 = params
    d_out = w3.shape[1]

    P = _round_up(max(H1, H2, d_out), 128)
    bias_pack = jnp.zeros((3, P), jnp.float32)
    bias_pack = bias_pack.at[0, :H1].set(b1.astype(jnp.float32))
    bias_pack = bias_pack.at[1, :H2].set(b2.astype(jnp.float32))
    bias_pack = bias_pack.at[2, :d_out].set(b3.astype(jnp.float32))

    return (w1.astype(compute_dtype),
            w2.astype(compute_dtype),
            w3.astype(compute_dtype),
            bias_pack), compute_dtype


def fully_connected_layer(x, prepared, compute_dtype=jnp.bfloat16, *, tb_max=512):
    """Pallas implementation of FullyConnectedLayer.forward.

    x: (B, D_in) -> (B, D_out)
    prepared: output of prepare_params(): (w1 (D_in,256), w2 (256,128),
              w3 (128,D_out), bias_pack (3,P))  [weights stored as (in, out)]
    """
    w1, w2, w3, bias_pack = prepared
    B, d_in = x.shape
    d_out = w3.shape[1]
    P = bias_pack.shape[1]

    TB = _pick_tb(B, tb_max)
    grid = (_cdiv(B, TB),)  # ragged last block is masked by Pallas (no pad/slice)

    kernel = functools.partial(_mlp_kernel, d_out=d_out,
                               compute_dtype=compute_dtype)
    out = pl.pallas_call(
        kernel,
        out_shape=jax.ShapeDtypeStruct((B, d_out), x.dtype),
        grid=grid,
        in_specs=[
            pl.BlockSpec((TB, d_in), lambda i: (i, 0)),    # x: batch-blocked stream
            pl.BlockSpec((d_in, H1), lambda i: (0, 0)),    # W1: VMEM-resident
            pl.BlockSpec((H1, H2), lambda i: (0, 0)),      # W2: VMEM-resident
            pl.BlockSpec((H2, d_out), lambda i: (0, 0)),   # W3: VMEM-resident
            pl.BlockSpec((3, P), lambda i: (0, 0)),        # packed biases (f32)
        ],
        out_specs=pl.BlockSpec((TB, d_out), lambda i: (i, 0)),
        compiler_params=pltpu.CompilerParams(
            dimension_semantics=("parallel",)),
    )(x, w1, w2, w3, bias_pack)

    return out


def init_params(key, d_in, d_out, dtype=jnp.float32):
    """Synthetic parameters matching nn.Linear default init (weights stored
    pre-transposed as (in_features, out_features))."""
    ks = jax.random.split(key, 6)

    def linear(kw, kb, fan_in, fan_out):
        bound = 1.0 / jnp.sqrt(fan_in)
        w = jax.random.uniform(kw, (fan_in, fan_out), dtype, -bound, bound)
        b = jax.random.uniform(kb, (fan_out,), dtype, -bound, bound)
        return w, b

    w1, b1 = linear(ks[0], ks[1], d_in, H1)
    w2, b2 = linear(ks[2], ks[3], H1, H2)
    w3, b3 = linear(ks[4], ks[5], H2, d_out)
    return (w1, b1, w2, b2, w3, b3)


def reference(x, params, emulate_bf16=True):
    """Pure-JAX reference of the forward (same GELU approximation). When
    emulate_bf16=True it mirrors the kernel's bf16-input / f32-accumulate
    matmuls so the comparison is apples-to-apples."""
    w1, b1, w2, b2, w3, b3 = params

    def dot(a, w):
        if emulate_bf16:
            a = a.astype(jnp.bfloat16)
            w = w.astype(jnp.bfloat16)
        return jnp.dot(a, w, preferred_element_type=jnp.float32)

    h = _gelu(dot(x, w1) + b1)
    h = _gelu(dot(h, w2) + b2)
    return dot(h, w3) + b3


if __name__ == "__main__":
    # Small shapes consistent with the module: input_dim=64, output_dim=128,
    # batch=8 (hidden widths 256 and 128 are fixed by the module).
    B, D_IN, D_OUT = 8, 64, 128
    key = jax.random.PRNGKey(0)
    kx, kp = jax.random.split(key)

    x = jax.random.normal(kx, (B, D_IN), jnp.float32)
    params = init_params(kp, D_IN, D_OUT)
    prepared, cdt = prepare_params(params, compute_dtype=jnp.bfloat16)

    out = fully_connected_layer(x, prepared, cdt)
    out = jax.block_until_ready(out)

    ref_bf16 = reference(x, params, emulate_bf16=True)   # matches kernel precision
    ref_f32 = reference(x, params, emulate_bf16=False)   # full-precision sanity

    assert out.shape == (B, D_OUT), out.shape
    assert jnp.allclose(out, ref_bf16, atol=1e-2, rtol=1e-2), \
        float(jnp.max(jnp.abs(out - ref_bf16)))
    assert jnp.allclose(out, ref_f32, atol=5e-2, rtol=5e-2), \
        float(jnp.max(jnp.abs(out - ref_f32)))
    print("KERNEL_OK")
</pallas_src>

<mosaic_0001>
module attributes {stable_mosaic.version = 11 : i64} {
  func.func @_mlp_kernel(%arg0: i32, %arg1: memref<8x64xf32, #tpu.memory_space<vmem>>, %arg2: memref<64x256xbf16, #tpu.memory_space<vmem>>, %arg3: memref<256x128xbf16, #tpu.memory_space<vmem>>, %arg4: memref<128x128xbf16, #tpu.memory_space<vmem>>, %arg5: memref<3x256xf32, #tpu.memory_space<vmem>>, %arg6: memref<8x128xf32, #tpu.memory_space<vmem>>) attributes {dimension_semantics = [#tpu.dimension_semantics<parallel>], iteration_bounds = array<i64: 1>, scalar_prefetch = 0 : i64, scratch_operands = 0 : i64, tpu.core_type = #tpu.core_type<tc>, window_params = [{transform_indices = @transform_0, window_bounds = array<i64: 8, 64>}, {pipeline_mode = #tpu.pipeline_mode<synchronous>, transform_indices = @transform_1, window_bounds = array<i64: 64, 256>}, {pipeline_mode = #tpu.pipeline_mode<synchronous>, transform_indices = @transform_2, window_bounds = array<i64: 256, 128>}, {pipeline_mode = #tpu.pipeline_mode<synchronous>, transform_indices = @transform_3, window_bounds = array<i64: 128, 128>}, {pipeline_mode = #tpu.pipeline_mode<synchronous>, transform_indices = @transform_4, window_bounds = array<i64: 3, 256>}, {transform_indices = @transform_5, window_bounds = array<i64: 8, 128>}]} {
    %c0 = arith.constant 0 : index
    %c0_0 = arith.constant 0 : index
    %0 = vector.load %arg1[%c0, %c0_0] : memref<8x64xf32, #tpu.memory_space<vmem>>, vector<8x64xf32>
    %1 = arith.truncf %0 : vector<8x64xf32> to vector<8x64xbf16>
    %c0_1 = arith.constant 0 : index
    %c0_2 = arith.constant 0 : index
    %2 = vector.load %arg5[%c0_1, %c0_2] : memref<3x256xf32, #tpu.memory_space<vmem>>, vector<1x256xf32>
    %c1 = arith.constant 1 : index
    %c0_3 = arith.constant 0 : index
    %3 = vector.load %arg5[%c1, %c0_3] : memref<3x256xf32, #tpu.memory_space<vmem>>, vector<1x128xf32>
    %c2 = arith.constant 2 : index
    %c0_4 = arith.constant 0 : index
    %4 = vector.load %arg5[%c2, %c0_4] : memref<3x256xf32, #tpu.memory_space<vmem>>, vector<1x128xf32>
    %c0_5 = arith.constant 0 : index
    %c0_6 = arith.constant 0 : index
    %5 = vector.load %arg2[%c0_5, %c0_6] : memref<64x256xbf16, #tpu.memory_space<vmem>>, vector<64x256xbf16>
    %cst = arith.constant dense<0.000000e+00> : vector<8x256xf32>
    %6 = tpu.matmul %1, %5, %cst {dimension_numbers = #tpu.dot_dimension_numbers<[1], [0], [0], [1], [0, 0, 1, 1], [], []>} : vector<8x64xbf16>, vector<64x256xbf16>, vector<8x256xf32> -> vector<8x256xf32>
    %7 = vector.broadcast %2 : vector<1x256xf32> to vector<8x256xf32>
    %8 = arith.addf %6, %7 : vector<8x256xf32>
    %9 = arith.mulf %8, %8 : vector<8x256xf32>
    %cst_7 = arith.constant 5.000000e-01 : f32
    %10 = vector.broadcast %cst_7 : f32 to vector<8x256xf32>
    %11 = arith.mulf %10, %8 : vector<8x256xf32>
    %cst_8 = arith.constant 0.797884583 : f32
    %12 = vector.broadcast %cst_8 : f32 to vector<8x256xf32>
    %13 = arith.mulf %12, %8 : vector<8x256xf32>
    %cst_9 = arith.constant 4.471500e-02 : f32
    %14 = vector.broadcast %cst_9 : f32 to vector<8x256xf32>
    %15 = arith.mulf %14, %9 : vector<8x256xf32>
    %cst_10 = arith.constant 1.000000e+00 : f32
    %16 = vector.broadcast %cst_10 : f32 to vector<8x256xf32>
    %17 = arith.addf %16, %15 : vector<8x256xf32>
    %18 = arith.mulf %13, %17 : vector<8x256xf32>
    %19 = math.tanh %18 : vector<8x256xf32>
    %cst_11 = arith.constant 1.000000e+00 : f32
    %20 = vector.broadcast %cst_11 : f32 to vector<8x256xf32>
    %21 = arith.addf %20, %19 : vector<8x256xf32>
    %22 = arith.mulf %11, %21 : vector<8x256xf32>
    %23 = arith.truncf %22 : vector<8x256xf32> to vector<8x256xbf16>
    %c0_12 = arith.constant 0 : index
    %c0_13 = arith.constant 0 : index
    %24 = vector.load %arg3[%c0_12, %c0_13] : memref<256x128xbf16, #tpu.memory_space<vmem>>, vector<256x128xbf16>
    %cst_14 = arith.constant dense<0.000000e+00> : vector<8x128xf32>
    %25 = tpu.matmul %23, %24, %cst_14 {dimension_numbers = #tpu.dot_dimension_numbers<[1], [0], [0], [1], [0, 0, 1, 1], [], []>} : vector<8x256xbf16>, vector<256x128xbf16>, vector<8x128xf32> -> vector<8x128xf32>
    %26 = vector.broadcast %3 : vector<1x128xf32> to vector<8x128xf32>
    %27 = arith.addf %25, %26 : vector<8x128xf32>
    %28 = arith.mulf %27, %27 : vector<8x128xf32>
    %cst_15 = arith.constant 5.000000e-01 : f32
    %29 = vector.broadcast %cst_15 : f32 to vector<8x128xf32>
    %30 = arith.mulf %29, %27 : vector<8x128xf32>
    %cst_16 = arith.constant 0.797884583 : f32
    %31 = vector.broadcast %cst_16 : f32 to vector<8x128xf32>
    %32 = arith.mulf %31, %27 : vector<8x128xf32>
    %cst_17 = arith.constant 4.471500e-02 : f32
    %33 = vector.broadcast %cst_17 : f32 to vector<8x128xf32>
    %34 = arith.mulf %33, %28 : vector<8x128xf32>
    %cst_18 = arith.constant 1.000000e+00 : f32
    %35 = vector.broadcast %cst_18 : f32 to vector<8x128xf32>
    %36 = arith.addf %35, %34 : vector<8x128xf32>
    %37 = arith.mulf %32, %36 : vector<8x128xf32>
    %38 = math.tanh %37 : vector<8x128xf32>
    %cst_19 = arith.constant 1.000000e+00 : f32
    %39 = vector.broadcast %cst_19 : f32 to vector<8x128xf32>
    %40 = arith.addf %39, %38 : vector<8x128xf32>
    %41 = arith.mulf %30, %40 : vector<8x128xf32>
    %42 = arith.truncf %41 : vector<8x128xf32> to vector<8x128xbf16>
    %c0_20 = arith.constant 0 : index
    %c0_21 = arith.constant 0 : index
    %43 = vector.load %arg4[%c0_20, %c0_21] : memref<128x128xbf16, #tpu.memory_space<vmem>>, vector<128x128xbf16>
    %cst_22 = arith.constant dense<0.000000e+00> : vector<8x128xf32>
    %44 = tpu.matmul %42, %43, %cst_22 {dimension_numbers = #tpu.dot_dimension_numbers<[1], [0], [0], [1], [0, 0, 1, 1], [], []>} : vector<8x128xbf16>, vector<128x128xbf16>, vector<8x128xf32> -> vector<8x128xf32>
    %45 = vector.broadcast %4 : vector<1x128xf32> to vector<8x128xf32>
    %46 = arith.addf %44, %45 : vector<8x128xf32>
    %c0_23 = arith.constant 0 : index
    %c0_24 = arith.constant 0 : index
    %47 = vector.load %arg6[%c0_23, %c0_24] : memref<8x128xf32, #tpu.memory_space<vmem>>, vector<8x128xf32>
    tpu.vector_store %arg6[%c0_23, %c0_24], %46 {strides = array<i32>} : memref<8x128xf32, #tpu.memory_space<vmem>>, vector<8x128xf32>,
    return
  }
  func.func @transform_0(%arg0: i32) -> (i32, i32) {
    %c0_i32 = arith.constant 0 : i32
    %c0_i32_0 = arith.constant 0 : i32
    return %arg0, %c0_i32 : i32, i32
  }
  func.func @transform_1(%arg0: i32) -> (i32, i32) {
    %c0_i32 = arith.constant 0 : i32
    %c0_i32_0 = arith.constant 0 : i32
    %c0_i32_1 = arith.constant 0 : i32
    return %c0_i32, %c0_i32_0 : i32, i32
  }
  func.func @transform_2(%arg0: i32) -> (i32, i32) {
    %c0_i32 = arith.constant 0 : i32
    %c0_i32_0 = arith.constant 0 : i32
    %c0_i32_1 = arith.constant 0 : i32
    return %c0_i32, %c0_i32_0 : i32, i32
  }
  func.func @transform_3(%arg0: i32) -> (i32, i32) {
    %c0_i32 = arith.constant 0 : i32
    %c0_i32_0 = arith.constant 0 : i32
    %c0_i32_1 = arith.constant 0 : i32
    return %c0_i32, %c0_i32_0 : i32, i32
  }
  func.func @transform_4(%arg0: i32) -> (i32, i32) {
    %c0_i32 = arith.constant 0 : i32
    %c0_i32_0 = arith.constant 0 : i32
    %c0_i32_1 = arith.constant 0 : i32
    return %c0_i32, %c0_i32_0 : i32, i32
  }
  func.func @transform_5(%arg0: i32) -> (i32, i32) {
    %c0_i32 = arith.constant 0 : i32
    %c0_i32_0 = arith.constant 0 : i32
    return %arg0, %c0_i32 : i32, i32
  }
}

</mosaic_0001>

<llo_original>
// kernel: tpu_custom_call.1
$region0: #{tpu_custom_call.1}
  #allocation0 [shape = 'u32[]', space=smem, size = 0x4, offset = 0x4, fixed_abs, tag = 'smem constant byte address 0x4 - core index']
  #allocation1 [shape = 'u32[144,128]{1,0:T(1,128)}', space=vmem, size = 0x12000, scoped, tag = 'internal scratch']
  %s0 = inlined_call_operand.hbm [shape: f32[8,64], index: 0, kind: input, shape index: {}]
  %s1 = inlined_call_operand.hbm [shape: bf16[64,256], index: 1, kind: input, shape index: {}]
  %s2 = inlined_call_operand.hbm [shape: bf16[256,128], index: 2, kind: input, shape index: {}]
  %s3 = inlined_call_operand.hbm [shape: bf16[128,128], index: 3, kind: input, shape index: {}]
  %s4 = inlined_call_operand.hbm [shape: f32[3,256], index: 4, kind: input, shape index: {}]
  %s5 = inlined_call_operand.hbm [shape: f32[8,128], index: 5, kind: output, shape index: {}]
  %s6 = sld [smem:[#allocation0]]
  $region50: #{tpu_custom_call.1} parent=0
    _
  %s8 = ssub.s32 1, %s6
  %s9 = scalar_select 0, %s8, %s6
  $region1: #{tpu_custom_call.1} parent=0
    #allocation2 [shape = 'u8[4096]{0}', space=vmem, size = 0x1000, scoped, tag = 'input window, operand 0, single buffered']
    #allocation3 [shape = 's32[1]{0}', space=sflag, size = 0x4, scoped, tag = 'scoped memory for tpu_custom_call.1']
    #allocation4 [shape = 's32[1]{0}', space=sflag, size = 0x4, scoped, tag = 'scoped memory for tpu_custom_call.1']
    #allocation5 [shape = 'u8[32768]{0}', space=vmem, size = 0x8000, scoped, tag = 'input window, operand 1, single buffered']
    #allocation6 [shape = 's32[1]{0}', space=sflag, size = 0x4, scoped, tag = 'scoped memory for tpu_custom_call.1']
    #allocation7 [shape = 'u8[65536]{0}', space=vmem, size = 0x10000, scoped, tag = 'input window, operand 2, single buffered']
    #allocation8 [shape = 'u8[32768]{0}', space=vmem, size = 0x8000, scoped, tag = 'input window, operand 3, single buffered']
    #allocation9 [shape = 's32[1]{0}', space=sflag, size = 0x4, scoped, tag = 'scoped memory for tpu_custom_call.1']
    #allocation10 [shape = 'u8[4096]{0}', space=vmem, size = 0x1000, scoped, tag = 'input window, operand 4, single buffered']
    #allocation11 [shape = 'u8[4096]{0}', space=vmem, size = 0x1000, scoped, tag = 'output window, operand 0, single buffered']
    %10 = vsyncpa [#allocation3], 0
    %11 = vsyncpa [#allocation6], 0
    %12 = vsyncpa [#allocation9], 0
    %13 = vsyncpa [#allocation4], 0
    // Predicated region
    $region2: #{tpu_custom_call.1} parent=1 // pred_check
      _
    $region3: #{tpu_custom_call.1} parent=1 // pred_check_branch
      %15 = sbr.rel (0) target = $region5
    $region4: #{tpu_custom_call.1} parent=1 // pred_region
      %s17 = ssub.s32 128, 128
      %18 = vsyncadd [#allocation3], %s17
      %s20 = sshll.u32 [#allocation2], 4
      %s21 = int_to_ptr.vmem [resolvable:$true] %s20
      %23 = dma.hbm_to_vmem [thread:$0]  %s0, 128, %s21, [#allocation3]
    $region5: #{tpu_custom_call.1} parent=1 // pred_fallthru
      _
    // Predicated region
    $region6: #{tpu_custom_call.1} parent=1 // pred_check
      _
    $region7: #{tpu_custom_call.1} parent=1 // pred_check_branch
      %25 = sbr.rel (0) target = $region9
    $region8: #{tpu_custom_call.1} parent=1 // pred_region
      %s27 = ssub.s32 1024, 1024
      %28 = vsyncadd [#allocation6], %s27
      %s29 = sshll.u32 [#allocation5], 4
      %s30 = int_to_ptr.vmem [resolvable:$true] %s29
      %35 = dma.hbm_to_vmem [thread:$0]  %s1, 1024, %s30, [#allocation6], 128, 128, 8
    $region9: #{tpu_custom_call.1} parent=1 // pred_fallthru
      _
    // Predicated region
    $region10: #{tpu_custom_call.1} parent=1 // pred_check
      _
    $region11: #{tpu_custom_call.1} parent=1 // pred_check_branch
      %37 = sbr.rel (0) target = $region13
    $region12: #{tpu_custom_call.1} parent=1 // pred_region
      %s39 = ssub.s32 2048, 2048
      %40 = vsyncadd [#allocation6], %s39
      %s41 = sshll.u32 [#allocation7], 4
      %s42 = int_to_ptr.vmem [resolvable:$true] %s41
      %47 = dma.hbm_to_vmem [thread:$0]  %s2, 2048, %s42, [#allocation6], 64, 64, 4
    $region13: #{tpu_custom_call.1} parent=1 // pred_fallthru
      _
    // Predicated region
    $region14: #{tpu_custom_call.1} parent=1 // pred_check
      _
    $region15: #{tpu_custom_call.1} parent=1 // pred_check_branch
      %49 = sbr.rel (0) target = $region17
    $region16: #{tpu_custom_call.1} parent=1 // pred_region
      %s51 = ssub.s32 1024, 1024
      %52 = vsyncadd [#allocation9], %s51
      %s53 = sshll.u32 [#allocation8], 4
      %s54 = int_to_ptr.vmem [resolvable:$true] %s53
      %59 = dma.hbm_to_vmem [thread:$0]  %s3, 1024, %s54, [#allocation9], 64, 64, 4
    $region17: #{tpu_custom_call.1} parent=1 // pred_fallthru
      _
    // Predicated region
    $region18: #{tpu_custom_call.1} parent=1 // pred_check
      _
    $region19: #{tpu_custom_call.1} parent=1 // pred_check_branch
      %61 = sbr.rel (0) target = $region21
    $region20: #{tpu_custom_call.1} parent=1 // pred_region
      %s63 = ssub.s32 128, 128
      %64 = vsyncadd [#allocation9], %s63
      %s66 = sshll.u32 [#allocation10], 4
      %s67 = int_to_ptr.vmem [resolvable:$true] %s66
      %69 = dma.hbm_to_vmem [thread:$0]  %s4, 128, %s67, [#allocation9]
    $region21: #{tpu_custom_call.1} parent=1 // pred_fallthru
      _
    // Predicated region
    $region22: #{tpu_custom_call.1} parent=1 // pred_check
      _
    $region23: #{tpu_custom_call.1} parent=1 // pred_check_branch
      %71 = sbr.rel (0) target = $region25
    $region24: #{tpu_custom_call.1} parent=1 // pred_region
      %72 = dma.done [#allocation3], 128
    $region25: #{tpu_custom_call.1} parent=1 // pred_fallthru
      _
    // Predicated region
    $region26: #{tpu_custom_call.1} parent=1 // pred_check
      _
    $region27: #{tpu_custom_call.1} parent=1 // pred_check_branch
      %74 = sbr.rel (0) target = $region29
    $region28: #{tpu_custom_call.1} parent=1 // pred_region
      %75 = dma.done [#allocation6], 1024
    $region29: #{tpu_custom_call.1} parent=1 // pred_fallthru
      _
    // Predicated region
    $region30: #{tpu_custom_call.1} parent=1 // pred_check
      _
    $region31: #{tpu_custom_call.1} parent=1 // pred_check_branch
      %77 = sbr.rel (0) target = $region33
    $region32: #{tpu_custom_call.1} parent=1 // pred_region
      %78 = dma.done [#allocation6], 2048
    $region33: #{tpu_custom_call.1} parent=1 // pred_fallthru
      _
    // Predicated region
    $region34: #{tpu_custom_call.1} parent=1 // pred_check
      _
    $region35: #{tpu_custom_call.1} parent=1 // pred_check_branch
      %80 = sbr.rel (0) target = $region37
    $region36: #{tpu_custom_call.1} parent=1 // pred_region
      %81 = dma.done [#allocation9], 1024
    $region37: #{tpu_custom_call.1} parent=1 // pred_fallthru
      _
    // Predicated region
    $region38: #{tpu_custom_call.1} parent=1 // pred_check
      _
    $region39: #{tpu_custom_call.1} parent=1 // pred_check_branch
      %83 = sbr.rel (0) target = $region41
    $region40: #{tpu_custom_call.1} parent=1 // pred_region
      %84 = dma.done [#allocation9], 128
    $region41: #{tpu_custom_call.1} parent=1 // pred_fallthru
      _
    %v86 = vld [vmem:[#allocation2] sm:$0xff]
    %v87 = vpack.c.bf16 %v86, %v86
    %v88 = vld [vmem:[#allocation10] ss:$4 sm:$0x3]
    %v89 = vld [vmem:[#allocation10 + $0x1] sm:$0x1]
    %v90 = vld [vmem:[#allocation10 + $0x2] sm:$0x1]
    %v91 = vld [vmem:[#allocation5] sm:$0xff]
    %v92 = vld [vmem:[#allocation5 + $0x8] sm:$0xff]
    %v93 = vld [vmem:[#allocation5 + $0x10] sm:$0xff]
    %v94 = vld [vmem:[#allocation5 + $0x18] sm:$0xff]
    %v95 = vld [vmem:[#allocation5 + $0x20] sm:$0xff]
    %v96 = vld [vmem:[#allocation5 + $0x28] sm:$0xff]
    %v97 = vld [vmem:[#allocation5 + $0x30] sm:$0xff]
    %v98 = vld [vmem:[#allocation5 + $0x38] sm:$0xff]
    %v100 = vlaneseq
    %v101 = vshrl.u32 %v100, 7
    %v102 = vsub.s32 0, %v101
    %v103 = vrot.slane %v88, %v102
    %v104 = vlaneseq
    %v105 = vshrl.u32 %v104, 7
    %v106 = vsub.s32 1, %v105
    %v107 = vrot.slane %v88, %v106
    %v118 = vunpack.c.l.b16 %v91
    %v119 = vunpack.c.h.b16 %v91
    %v120 = vunpack.c.l.b16 %v92
    %v121 = vunpack.c.h.b16 %v92
    %v122 = vunpack.c.l.b16 %v93
    %v123 = vunpack.c.h.b16 %v93
    %v124 = vunpack.c.l.b16 %v94
    %v125 = vunpack.c.h.b16 %v94
    %v126 = vunpack.c.l.b16 %v95
    %v127 = vunpack.c.h.b16 %v95
    %v128 = vunpack.c.l.b16 %v96
    %v129 = vunpack.c.h.b16 %v96
    %v130 = vunpack.c.l.b16 %v97
    %v131 = vunpack.c.h.b16 %v97
    %v132 = vunpack.c.l.b16 %v98
    %v133 = vunpack.c.h.b16 %v98
    %v134 = vpack.c.b16 %v120, %v118
    %v135 = vpack.c.b16 %v121, %v119
    %v136 = vpack.c.b16 %v124, %v122
    %v137 = vpack.c.b16 %v125, %v123
    %v138 = vpack.c.b16 %v128, %v126
    %v139 = vpack.c.b16 %v129, %v127
    %v140 = vpack.c.b16 %v132, %v130
    %v141 = vpack.c.b16 %v133, %v131
    %vm150 = vcmask 523264
    %v152 = vsel %vm150, %v87, 0
    %154 = vmatprep.subr.bf16.mxu0 0
    %155 = vmatpush1.bf16.msra.mxu0 0
    %156 = vmatprep.subr.bf16.mxu0 0
    %157 = vmatpush1.bf16.msra.mxu0 0
    %158 = vmatprep.subr.bf16.mxu0 0
    %159 = vmatpush1.bf16.msra.mxu0 0
    %160 = vmatprep.subr.bf16.mxu0 0
    %161 = vmatpush1.bf16.msra.mxu0 0
    %162 = vmatprep.subr.bf16.mxu0 %v141
    %163 = vmatpush1.bf16.msra.mxu0 %v140
    %164 = vmatprep.subr.bf16.mxu0 %v139
    %165 = vmatpush1.bf16.msra.mxu0 %v138
    %166 = vmatprep.subr.bf16.mxu0 %v137
    %167 = vmatpush1.bf16.msra.mxu0 %v136
    %168 = vmatprep.subr.bf16.mxu0 %v135
    %169 = vmatpush1.bf16.msra.mxu0 %v134
    %170 = vmatprep.subr.bf16.mxu0 0
    %171 = vmatpush2.bf16.msra.mxu0 0
    %172 = vmatprep.subr.bf16.mxu0 0
    %173 = vmatpush2.bf16.msra.mxu0 0
    %174 = vmatprep.subr.bf16.mxu0 0
    %175 = vmatpush2.bf16.msra.mxu0 0
    %176 = vmatprep.subr.bf16.mxu0 0
    %177 = vmatpush2.bf16.msra.mxu0 0
    %178 = vmatprep.subr.bf16.mxu0 0
    %179 = vmatpush2.bf16.msra.mxu0 0
    %180 = vmatprep.subr.bf16.mxu0 0
    %181 = vmatpush2.bf16.msra.mxu0 0
    %182 = vmatprep.subr.bf16.mxu0 0
    %183 = vmatpush2.bf16.msra.mxu0 0
    %184 = vmatprep.subr.bf16.mxu0 0
    %185 = vmatpush2.bf16.msra.mxu0 0
    %186 = vmatprep.mubr.bf16.mxu0 0
    %187 = vmatmul.mubr.bf16.gmra.mxu0 %v152
    %v188 = vpop.f32.mrf.mxu0
    %v189 = vadd.f32 %v103, %v188
    %v190 = vpop.f32.mrf.mxu0
    %v191 = vadd.f32 %v107, %v190
    %v192 = vpop.f32.mrf.mxu0
    %v193 = vpop.f32.mrf.mxu0
    %194 = vdwg.mxu0
    %v195 = vmul.f32 %v189, %v189
    %v196 = vmul.f32 %v191, %v191
    %v197 = vmul.f32 %v189, 0.5
    %v198 = vmul.f32 %v191, 0.5
    %v199 = vmul.f32 %v189, 0.7978846
    %v200 = vmul.f32 %v191, 0.7978846
    %v201 = vmul.f32 %v195, 0.044715
    %v202 = vmul.f32 %v196, 0.044715
    %v203 = vadd.f32 %v201, 1.0
    %v204 = vadd.f32 %v202, 1.0
    %v205 = vmul.f32 %v199, %v203
    %v206 = vmul.f32 %v200, %v204
    %v207 = vtanh.pop %v205
    %v208 = vtanh.pop %v206
    %v209 = vadd.f32 %v207, 1.0
    %v210 = vadd.f32 %v208, 1.0
    %v211 = vmul.f32 %v197, %v209
    %v212 = vmul.f32 %v198, %v210
    %v213 = vpack.c.bf16 %v211, %v211
    %v214 = vpack.c.bf16 %v212, %v212
    %v215 = vld [vmem:[#allocation7] sm:$0xf]
    %v216 = vld [vmem:[#allocation7 + $0x4] sm:$0xf]
    %v217 = vld [vmem:[#allocation7 + $0x8] sm:$0xf]
    %v218 = vld [vmem:[#allocation7 + $0xc] sm:$0xf]
    %v219 = vld [vmem:[#allocation7 + $0x10] sm:$0xf]
    %v220 = vld [vmem:[#allocation7 + $0x14] sm:$0xf]
    %v221 = vld [vmem:[#allocation7 + $0x18] sm:$0xf]
    %v222 = vld [vmem:[#allocation7 + $0x1c] sm:$0xf]
    %v223 = vld [vmem:[#allocation7 + $0x20] sm:$0xf]
    %v224 = vld [vmem:[#allocation7 + $0x24] sm:$0xf]
    %v225 = vld [vmem:[#allocation7 + $0x28] sm:$0xf]
    %v226 = vld [vmem:[#allocation7 + $0x2c] sm:$0xf]
    %v227 = vld [vmem:[#allocation7 + $0x30] sm:$0xf]
    %v228 = vld [vmem:[#allocation7 + $0x34] sm:$0xf]
    %v229 = vld [vmem:[#allocation7 + $0x38] sm:$0xf]
    %v230 = vld [vmem:[#allocation7 + $0x3c] sm:$0xf]
    %v231 = vld [vmem:[#allocation7 + $0x40] sm:$0xf]
    %v232 = vld [vmem:[#allocation7 + $0x44] sm:$0xf]
    %v233 = vld [vmem:[#allocation7 + $0x48] sm:$0xf]
    %v234 = vld [vmem:[#allocation7 + $0x4c] sm:$0xf]
    %v235 = vld [vmem:[#allocation7 + $0x50] sm:$0xf]
    %v236 = vld [vmem:[#allocation7 + $0x54] sm:$0xf]
    %v237 = vld [vmem:[#allocation7 + $0x58] sm:$0xf]
    %v238 = vld [vmem:[#allocation7 + $0x5c] sm:$0xf]
    %v239 = vld [vmem:[#allocation7 + $0x60] sm:$0xf]
    %v240 = vld [vmem:[#allocation7 + $0x64] sm:$0xf]
    %v241 = vld [vmem:[#allocation7 + $0x68] sm:$0xf]
    %v242 = vld [vmem:[#allocation7 + $0x6c] sm:$0xf]
    %v243 = vld [vmem:[#allocation7 + $0x70] sm:$0xf]
    %v244 = vld [vmem:[#allocation7 + $0x74] sm:$0xf]
    %v245 = vld [vmem:[#allocation7 + $0x78] sm:$0xf]
    %v246 = vld [vmem:[#allocation7 + $0x7c] sm:$0xf]
    %v247 = vlaneseq
    %v248 = vshrl.u32 %v247, 7
    %v249 = vsub.s32 0, %v248
    %v250 = vrot.slane %v89, %v249
    %v283 = vunpack.c.l.b16 %v215
    %v284 = vunpack.c.l.b16 %v216
    %v285 = vunpack.c.l.b16 %v217
    %v286 = vunpack.c.l.b16 %v218
    %v287 = vunpack.c.l.b16 %v219
    %v288 = vunpack.c.l.b16 %v220
    %v289 = vunpack.c.l.b16 %v221
    %v290 = vunpack.c.l.b16 %v222
    %v291 = vunpack.c.l.b16 %v223
    %v292 = vunpack.c.l.b16 %v224
    %v293 = vunpack.c.l.b16 %v225
    %v294 = vunpack.c.l.b16 %v226
    %v295 = vunpack.c.l.b16 %v227
    %v296 = vunpack.c.l.b16 %v228
    %v297 = vunpack.c.l.b16 %v229
    %v298 = vunpack.c.l.b16 %v230
    %v299 = vunpack.c.l.b16 %v231
    %v300 = vunpack.c.l.b16 %v232
    %v301 = vunpack.c.l.b16 %v233
    %v302 = vunpack.c.l.b16 %v234
    %v303 = vunpack.c.l.b16 %v235
    %v304 = vunpack.c.l.b16 %v236
    %v305 = vunpack.c.l.b16 %v237
    %v306 = vunpack.c.l.b16 %v238
    %v307 = vunpack.c.l.b16 %v239
    %v308 = vunpack.c.l.b16 %v240
    %v309 = vunpack.c.l.b16 %v241
    %v310 = vunpack.c.l.b16 %v242
    %v311 = vunpack.c.l.b16 %v243
    %v312 = vunpack.c.l.b16 %v244
    %v313 = vunpack.c.l.b16 %v245
    %v314 = vunpack.c.l.b16 %v246
    %v315 = vpack.c.b16 %v284, %v283
    %v316 = vpack.c.b16 %v286, %v285
    %v317 = vpack.c.b16 %v288, %v287
    %v318 = vpack.c.b16 %v290, %v289
    %v319 = vpack.c.b16 %v292, %v291
    %v320 = vpack.c.b16 %v294, %v293
    %v321 = vpack.c.b16 %v296, %v295
    %v322 = vpack.c.b16 %v298, %v297
    %v323 = vpack.c.b16 %v300, %v299
    %v324 = vpack.c.b16 %v302, %v301
    %v325 = vpack.c.b16 %v304, %v303
    %v326 = vpack.c.b16 %v306, %v305
    %v327 = vpack.c.b16 %v308, %v307
    %v328 = vpack.c.b16 %v310, %v309
    %v329 = vpack.c.b16 %v312, %v311
    %v330 = vpack.c.b16 %v314, %v313
    %347 = vmatprep.subr.bf16.mxu0 0
    %348 = vmatpush1.bf16.msra.mxu0 %v322
    %349 = vmatprep.subr.bf16.mxu0 0
    %350 = vmatpush1.bf16.msra.mxu0 %v321
    %351 = vmatprep.subr.bf16.mxu0 0
    %352 = vmatpush1.bf16.msra.mxu0 %v320
    %353 = vmatprep.subr.bf16.mxu0 0
    %354 = vmatpush1.bf16.msra.mxu0 %v319
    %355 = vmatprep.subr.bf16.mxu0 0
    %356 = vmatpush1.bf16.msra.mxu0 %v318
    %357 = vmatprep.subr.bf16.mxu0 0
    %358 = vmatpush1.bf16.msra.mxu0 %v317
    %359 = vmatprep.subr.bf16.mxu0 0
    %360 = vmatpush1.bf16.msra.mxu0 %v316
    %361 = vmatprep.subr.bf16.mxu0 0
    %362 = vmatpush1.bf16.msra.mxu0 %v315
    %363 = vmatprep.subr.bf16.mxu0 0
    %364 = vmatpush2.bf16.msra.mxu0 %v330
    %365 = vmatprep.subr.bf16.mxu0 0
    %366 = vmatpush2.bf16.msra.mxu0 %v329
    %367 = vmatprep.subr.bf16.mxu0 0
    %368 = vmatpush2.bf16.msra.mxu0 %v328
    %369 = vmatprep.subr.bf16.mxu0 0
    %370 = vmatpush2.bf16.msra.mxu0 %v327
    %371 = vmatprep.subr.bf16.mxu0 0
    %372 = vmatpush2.bf16.msra.mxu0 %v326
    %373 = vmatprep.subr.bf16.mxu0 0
    %374 = vmatpush2.bf16.msra.mxu0 %v325
    %375 = vmatprep.subr.bf16.mxu0 0
    %376 = vmatpush2.bf16.msra.mxu0 %v324
    %377 = vmatprep.subr.bf16.mxu0 0
    %378 = vmatpush2.bf16.msra.mxu0 %v323
    %379 = vmatprep.mubr.bf16.mxu0 %v214
    %380 = vmatmul.mubr.bf16.gmra.mxu0 %v213
    %v381 = vpop.f32.mrf.mxu0
    %v382 = vadd.f32 %v250, %v381
    %v383 = vpop.f32.mrf.mxu0
    %v384 = vpop.f32.mrf.mxu0
    %v385 = vpop.f32.mrf.mxu0
    %386 = vdwg.mxu0
    %v387 = vmul.f32 %v382, %v382
    %v388 = vmul.f32 %v382, 0.5
    %v389 = vmul.f32 %v382, 0.7978846
    %v390 = vmul.f32 %v387, 0.044715
    %v391 = vadd.f32 %v390, 1.0
    %v392 = vmul.f32 %v389, %v391
    %v393 = vtanh.pop %v392
    %v394 = vadd.f32 %v393, 1.0
    %v395 = vmul.f32 %v388, %v394
    %v396 = vpack.c.bf16 %v395, %v395
    %v397 = vld [vmem:[#allocation8] sm:$0xf]
    %v398 = vld [vmem:[#allocation8 + $0x4] sm:$0xf]
    %v399 = vld [vmem:[#allocation8 + $0x8] sm:$0xf]
    %v400 = vld [vmem:[#allocation8 + $0xc] sm:$0xf]
    %v401 = vld [vmem:[#allocation8 + $0x10] sm:$0xf]
    %v402 = vld [vmem:[#allocation8 + $0x14] sm:$0xf]
    %v403 = vld [vmem:[#allocation8 + $0x18] sm:$0xf]
    %v404 = vld [vmem:[#allocation8 + $0x1c] sm:$0xf]
    %v405 = vld [vmem:[#allocation8 + $0x20] sm:$0xf]
    %v406 = vld [vmem:[#allocation8 + $0x24] sm:$0xf]
    %v407 = vld [vmem:[#allocation8 + $0x28] sm:$0xf]
    %v408 = vld [vmem:[#allocation8 + $0x2c] sm:$0xf]
    %v409 = vld [vmem:[#allocation8 + $0x30] sm:$0xf]
    %v410 = vld [vmem:[#allocation8 + $0x34] sm:$0xf]
    %v411 = vld [vmem:[#allocation8 + $0x38] sm:$0xf]
    %v412 = vld [vmem:[#allocation8 + $0x3c] sm:$0xf]
    %v413 = vlaneseq
    %v414 = vshrl.u32 %v413, 7
    %v415 = vsub.s32 0, %v414
    %v416 = vrot.slane %v90, %v415
    %v433 = vunpack.c.l.b16 %v397
    %v434 = vunpack.c.l.b16 %v398
    %v435 = vunpack.c.l.b16 %v399
    %v436 = vunpack.c.l.b16 %v400
    %v437 = vunpack.c.l.b16 %v401
    %v438 = vunpack.c.l.b16 %v402
    %v439 = vunpack.c.l.b16 %v403
    %v440 = vunpack.c.l.b16 %v404
    %v441 = vunpack.c.l.b16 %v405
    %v442 = vunpack.c.l.b16 %v406
    %v443 = vunpack.c.l.b16 %v407
    %v444 = vunpack.c.l.b16 %v408
    %v445 = vunpack.c.l.b16 %v409
    %v446 = vunpack.c.l.b16 %v410
    %v447 = vunpack.c.l.b16 %v411
    %v448 = vunpack.c.l.b16 %v412
    %v449 = vpack.c.b16 %v434, %v433
    %v450 = vpack.c.b16 %v436, %v435
    %v451 = vpack.c.b16 %v438, %v437
    %v452 = vpack.c.b16 %v440, %v439
    %v453 = vpack.c.b16 %v442, %v441
    %v454 = vpack.c.b16 %v444, %v443
    %v455 = vpack.c.b16 %v446, %v445
    %v456 = vpack.c.b16 %v448, %v447
    %465 = vmatprep.subr.bf16.mxu0 0
    %466 = vmatpush1.bf16.msra.mxu0 %v456
    %467 = vmatprep.subr.bf16.mxu0 0
    %468 = vmatpush1.bf16.msra.mxu0 %v455
    %469 = vmatprep.subr.bf16.mxu0 0
    %470 = vmatpush1.bf16.msra.mxu0 %v454
    %471 = vmatprep.subr.bf16.mxu0 0
    %472 = vmatpush1.bf16.msra.mxu0 %v453
    %473 = vmatprep.subr.bf16.mxu0 0
    %474 = vmatpush1.bf16.msra.mxu0 %v452
    %475 = vmatprep.subr.bf16.mxu0 0
    %476 = vmatpush1.bf16.msra.mxu0 %v451
    %477 = vmatprep.subr.bf16.mxu0 0
    %478 = vmatpush1.bf16.msra.mxu0 %v450
    %479 = vmatprep.subr.bf16.mxu0 0
    %480 = vmatpush1.bf16.msra.mxu0 %v449
    %481 = vmatprep.subr.bf16.mxu0 0
    %482 = vmatpush2.bf16.msra.mxu0 0
    %483 = vmatprep.subr.bf16.mxu0 0
    %484 = vmatpush2.bf16.msra.mxu0 0
    %485 = vmatprep.subr.bf16.mxu0 0
    %486 = vmatpush2.bf16.msra.mxu0 0
    %487 = vmatprep.subr.bf16.mxu0 0
    %488 = vmatpush2.bf16.msra.mxu0 0
    %489 = vmatprep.subr.bf16.mxu0 0
    %490 = vmatpush2.bf16.msra.mxu0 0
    %491 = vmatprep.subr.bf16.mxu0 0
    %492 = vmatpush2.bf16.msra.mxu0 0
    %493 = vmatprep.subr.bf16.mxu0 0
    %494 = vmatpush2.bf16.msra.mxu0 0
    %495 = vmatprep.subr.bf16.mxu0 0
    %496 = vmatpush2.bf16.msra.mxu0 0
    %497 = vmatprep.mubr.bf16.mxu0 0
    %498 = vmatmul.mubr.bf16.gmra.mxu0 %v396
    %v499 = vpop.f32.mrf.mxu0
    %v500 = vadd.f32 %v416, %v499
    %v501 = vpop.f32.mrf.mxu0
    %v502 = vpop.f32.mrf.mxu0
    %v503 = vpop.f32.mrf.mxu0
    %504 = vdwg.mxu0
    %505 = vst [vmem:[#allocation11] sm:$0xff] %v500
    // Predicated region
    $region42: #{tpu_custom_call.1} parent=1 // pred_check
      _
    $region43: #{tpu_custom_call.1} parent=1 // pred_check_branch
      %507 = sbr.rel (0) target = $region45
    $region44: #{tpu_custom_call.1} parent=1 // pred_region
      %s509 = ssub.s32 128, 128
      %510 = vsyncadd [#allocation4], %s509
      %s512 = sshll.u32 [#allocation11], 4
      %s513 = int_to_ptr.vmem [resolvable:$true] %s512
      %515 = dma.vmem_to_hbm [thread:$0]  %s513, 128, %s5, [#allocation4]
    $region45: #{tpu_custom_call.1} parent=1 // pred_fallthru
      _
    // Predicated region
    $region46: #{tpu_custom_call.1} parent=1 // pred_check
      _
    $region47: #{tpu_custom_call.1} parent=1 // pred_check_branch
      %517 = sbr.rel (0) target = $region49
    $region48: #{tpu_custom_call.1} parent=1 // pred_region
      %518 = dma.done [#allocation4], 128
    $region49: #{tpu_custom_call.1} parent=1 // pred_fallthru
      _
    %519 = vsyncpa [#allocation3], 1
    %520 = vsyncpa [#allocation6], 1
    %521 = vsyncpa [#allocation9], 1
    %522 = vsyncpa [#allocation4], 1

</llo_original>
